<compile_context>
chip_gen: v6e
topology: v6e:2x2x1
jax: 0.10.0
libtpu: 0.0.40
codegen_flags: <defaults>
</compile_context>

<pallas_src>
import math

import jax
import jax.numpy as jnp
from jax.experimental import pallas as pl
from jax.experimental.pallas import tpu as pltpu


_LANES = 128  # vreg lane width; an (N, 128) f32 slab is a single vreg for N <= 8


def write_head_kernel(x_ref, mem_ref, prev_ref, w_ref, b_ref,
                      mem_out_ref, addr_out_ref):
    n_banks = mem_ref.shape[1]          # N
    mbank = mem_ref.shape[2]            # M
    feat = w_ref.shape[1]               # 3M + 1 + S
    num_shift = feat - 3 * mbank - 1    # S = 2*max_shift + 1
    max_shift = num_shift // 2

    x = mem = prev = None  # (placeholders for readability below)
    x = x_ref[0]                        # (1, D)
    mem = mem_ref[0]                    # (N, M)   N on sublanes, M on lanes
    prev = prev_ref[0]                  # (N, 1)

    # ---- single fused linear: [query | gate | shift logits | erase | add] --
    fused = jnp.dot(x, w_ref[...], preferred_element_type=jnp.float32) \
        + b_ref[...]                                                  # (1, F)
    query = fused[:, :mbank]                                          # (1, M)
    gate = jax.nn.sigmoid(fused[:, mbank:mbank + 1])                  # (1, 1)
    shift_logits = fused[:, mbank + 1:mbank + 1 + num_shift]          # (1, S)
    erase = jax.nn.sigmoid(
        fused[:, mbank + 1 + num_shift:2 * mbank + 1 + num_shift])    # (1, M)
    add = fused[:, 2 * mbank + 1 + num_shift:]                        # (1, M)

    # ---- softmax over shift offsets (tiny, lane axis) -----------------------
    sl = shift_logits - jnp.max(shift_logits, axis=1, keepdims=True)
    se = jnp.exp(sl)
    shift_dist = se * pl.reciprocal(
        jnp.sum(se, axis=1, keepdims=True), approx=False)             # (1, S)

    # ---- content-based addressing (N on the sublane axis) -------------------
    # NOTE: at M=16 the VPU multiply + lane reduce is negligible; for large M
    # this contraction should be routed to the MXU via a batched dot_general.
    scores = jnp.sum(mem * query, axis=1, keepdims=True)              # (N, 1)
    scores = scores * (1.0 / math.sqrt(mbank))
    smax = jnp.max(scores, axis=0, keepdims=True)                     # (1, 1)
    sexp = jnp.exp(scores - smax)                                     # (N, 1)
    content = sexp * pl.reciprocal(
        jnp.sum(sexp, axis=0, keepdims=True), approx=False)           # (N, 1)

    # ---- gated interpolation with the previous addressing -------------------
    interp = gate * content + (1.0 - gate) * prev                     # (N, 1)

    # ---- circular shift via XLU sublane rotations ----------------------------
    # shifted[n] = sum_s dist[s] * interp[(n + s - max_shift) % N]
    # Broadcast interp across the 128 lanes so the rolled slab is a fully
    # (8,128)-aligned vreg, then rotate along the sublane (N) axis.
    interp_b = jnp.broadcast_to(interp, (n_banks, _LANES))            # (N, 128)
    shifted_b = shift_dist[:, max_shift:max_shift + 1] * interp_b     # delta=0
    for s in range(num_shift):
        delta = s - max_shift
        if delta == 0:
            continue
        # jnp.roll semantics: rolled[n] = interp[(n + delta) % N]
        rolled = pltpu.roll(interp_b, (-delta) % n_banks, axis=0)
        shifted_b = shifted_b + shift_dist[:, s:s + 1] * rolled
    shifted = shifted_b[:, 0:1]                                       # (N, 1)

    # ---- erase / add memory update -------------------------------------------
    new_mem = (1.0 - shifted * erase) * mem + shifted * add           # (N, M)

    mem_out_ref[0] = new_mem
    addr_out_ref[0] = shifted


def write_head_forward(x, memory, prev_addr, w_args, b_args, w_ea, b_ea):
    B, N, M = memory.shape
    D = x.shape[1]
    F_args = w_args.shape[1]            # M + 1 + S
    S = F_args - M - 1
    F = F_args + w_ea.shape[1]          # 3M + 1 + S

    # Fuse the two linear layers into one MXU push.
    w_fused = jnp.concatenate([w_args, w_ea], axis=1)                 # (D, F)
    b_fused = jnp.concatenate([b_args, b_ea], axis=1)                 # (1, F)

    # Present per-batch tensors so every blocked (last-two) dim equals the full
    # array dim, and N sits on the sublane axis inside the kernel.
    x3 = x.reshape(B, 1, D)
    prev3 = prev_addr.reshape(B, N, 1)

    flops = 2 * B * D * F + 10 * B * N * M
    bytes_accessed = 4 * (2 * B * N * M + B * (D + 2 * N) + D * F + F)
    transcendentals = B * (N + S + 2 * M + 1)

    mem_out, addr3 = pl.pallas_call(
        write_head_kernel,
        grid=(B,),
        in_specs=[
            pl.BlockSpec((1, 1, D), lambda b: (b, 0, 0)),    # x
            pl.BlockSpec((1, N, M), lambda b: (b, 0, 0)),    # memory
            pl.BlockSpec((1, N, 1), lambda b: (b, 0, 0)),    # previous addressing
            pl.BlockSpec((D, F), lambda b: (0, 0)),          # fused weights
            pl.BlockSpec((1, F), lambda b: (0, 0)),          # fused bias
        ],
        out_specs=(
            pl.BlockSpec((1, N, M), lambda b: (b, 0, 0)),    # new memory
            pl.BlockSpec((1, N, 1), lambda b: (b, 0, 0)),    # addressing
        ),
        out_shape=(
            jax.ShapeDtypeStruct((B, N, M), jnp.float32),
            jax.ShapeDtypeStruct((B, N, 1), jnp.float32),
        ),
        compiler_params=pltpu.CompilerParams(
            dimension_semantics=("parallel",),       # batch tiles independent
            vmem_limit_bytes=16 * 1024 * 1024,       # well under v7x's 64 MiB
        ),
        cost_estimate=pl.CostEstimate(
            flops=flops,
            transcendentals=transcendentals,
            bytes_accessed=bytes_accessed),
    )(x3, memory, prev3, w_fused, b_fused)
    return mem_out, addr3.reshape(B, N)


# ---------------------------------------------------------------------------
# Plain-JAX reference (mirrors the PyTorch module) for a correctness check.
# ---------------------------------------------------------------------------
def write_head_reference(x, memory, prev_addr, w_args, b_args, w_ea, b_ea,
                         max_shift):
    M = memory.shape[2]
    N = memory.shape[1]
    args = x @ w_args + b_args
    query = args[:, :M]
    gate = jax.nn.sigmoid(args[:, M:M + 1])
    dist = jax.nn.softmax(args[:, M + 1:], axis=1)
    scores = jnp.einsum('bnm,bm->bn', memory, query) / math.sqrt(M)
    content = jax.nn.softmax(scores, axis=1)
    interp = gate * content + (1.0 - gate) * prev_addr
    idxs = jnp.arange(N)
    shifts = jnp.arange(2 * max_shift + 1) - max_shift
    table = (idxs[:, None] + shifts[None, :]) % N                 # (N, S)
    shifted = jnp.sum(dist[:, None, :] * interp[:, table], axis=2)
    ea = x @ w_ea + b_ea
    erase = jax.nn.sigmoid(ea[:, :M])
    add = ea[:, M:]
    new_mem = (1.0 - shifted[:, :, None] * erase[:, None, :]) * memory \
        + shifted[:, :, None] * add[:, None, :]
    return new_mem, shifted


def linear_init(key, fan_in, fan_out):
    # Deterministic synthetic init (PyTorch-Linear-style uniform bounds).
    k1, k2 = jax.random.split(key)
    bound = 1.0 / math.sqrt(fan_in)
    w = jax.random.uniform(k1, (fan_in, fan_out), minval=-bound, maxval=bound,
                           dtype=jnp.float32)
    b = jax.random.uniform(k2, (1, fan_out), minval=-bound, maxval=bound,
                           dtype=jnp.float32)
    return w, b


if __name__ == "__main__":
    # Small shapes consistent with the module.
    B = 2                 # batch
    D = 32                # input_size
    N = 8                 # num_memory_banks
    M = 16                # memory_bank_size
    max_shift = 1         # -> 3 shift offsets

    key = jax.random.PRNGKey(0)
    k_x, k_mem, k_prev, k_args, k_ea = jax.random.split(key, 5)

    x = jax.random.normal(k_x, (B, D), dtype=jnp.float32)
    memory = jax.random.normal(k_mem, (B, N, M), dtype=jnp.float32)
    prev_logits = jax.random.normal(k_prev, (B, N), dtype=jnp.float32)
    prev_addr = jax.nn.softmax(prev_logits, axis=1)

    num_shift_offsets = 2 * max_shift + 1
    w_args, b_args = linear_init(k_args, D, M + 1 + num_shift_offsets)
    w_ea, b_ea = linear_init(k_ea, D, 2 * M)

    mem_out, addr_out = write_head_forward(
        x, memory, prev_addr, w_args, b_args, w_ea, b_ea)
    jax.block_until_ready((mem_out, addr_out))

    mem_ref, addr_ref = write_head_reference(
        x, memory, prev_addr, w_args, b_args, w_ea, b_ea, max_shift)

    assert mem_out.shape == (B, N, M) and addr_out.shape == (B, N)
    assert jnp.allclose(mem_out, mem_ref, atol=1e-5, rtol=1e-5)
    assert jnp.allclose(addr_out, addr_ref, atol=1e-5, rtol=1e-5)

    print("KERNEL_OK")
</pallas_src>

<mosaic_0001>
module attributes {stable_mosaic.version = 11 : i64} {
  func.func @write_head_kernel(%arg0: i32, %arg1: memref<1x1x32xf32, #tpu.memory_space<vmem>>, %arg2: memref<1x8x16xf32, #tpu.memory_space<vmem>>, %arg3: memref<1x8x1xf32, #tpu.memory_space<vmem>>, %arg4: memref<32x52xf32, #tpu.memory_space<vmem>>, %arg5: memref<1x52xf32, #tpu.memory_space<vmem>>, %arg6: memref<1x8x16xf32, #tpu.memory_space<vmem>>, %arg7: memref<1x8x1xf32, #tpu.memory_space<vmem>>) attributes {dimension_semantics = [#tpu.dimension_semantics<parallel>], iteration_bounds = array<i64: 2>, scalar_prefetch = 0 : i64, scratch_operands = 0 : i64, tpu.core_type = #tpu.core_type<tc>, window_params = [{transform_indices = @transform_0, window_bounds = array<i64: 1, 1, 32>}, {transform_indices = @transform_1, window_bounds = array<i64: 1, 8, 16>}, {transform_indices = @transform_2, window_bounds = array<i64: 1, 8, 1>}, {pipeline_mode = #tpu.pipeline_mode<synchronous>, transform_indices = @transform_3, window_bounds = array<i64: 32, 52>}, {pipeline_mode = #tpu.pipeline_mode<synchronous>, transform_indices = @transform_4, window_bounds = array<i64: 1, 52>}, {transform_indices = @transform_5, window_bounds = array<i64: 1, 8, 16>}, {transform_indices = @transform_6, window_bounds = array<i64: 1, 8, 1>}]} {
    %c0 = arith.constant 0 : index
    %c0_0 = arith.constant 0 : index
    %c0_1 = arith.constant 0 : index
    %0 = vector.load %arg1[%c0, %c0_0, %c0_1] : memref<1x1x32xf32, #tpu.memory_space<vmem>>, vector<1x1x32xf32>
    %1 = vector.shape_cast %0 : vector<1x1x32xf32> to vector<1x32xf32>
    %c0_2 = arith.constant 0 : index
    %c0_3 = arith.constant 0 : index
    %c0_4 = arith.constant 0 : index
    %2 = vector.load %arg2[%c0_2, %c0_3, %c0_4] : memref<1x8x16xf32, #tpu.memory_space<vmem>>, vector<1x8x16xf32>
    %3 = vector.shape_cast %2 : vector<1x8x16xf32> to vector<8x16xf32>
    %c0_5 = arith.constant 0 : index
    %c0_6 = arith.constant 0 : index
    %c0_7 = arith.constant 0 : index
    %4 = vector.load %arg3[%c0_5, %c0_6, %c0_7] : memref<1x8x1xf32, #tpu.memory_space<vmem>>, vector<1x8x1xf32>
    %5 = vector.shape_cast %4 : vector<1x8x1xf32> to vector<8x1xf32>
    %c0_8 = arith.constant 0 : index
    %c0_9 = arith.constant 0 : index
    %6 = vector.load %arg4[%c0_8, %c0_9] : memref<32x52xf32, #tpu.memory_space<vmem>>, vector<32x52xf32>
    %cst = arith.constant dense<0.000000e+00> : vector<1x52xf32>
    %7 = tpu.matmul %1, %6, %cst {dimension_numbers = #tpu.dot_dimension_numbers<[1], [0], [0], [1], [0, 0, 1, 1], [], []>} : vector<1x32xf32>, vector<32x52xf32>, vector<1x52xf32> -> vector<1x52xf32>
    %c0_10 = arith.constant 0 : index
    %c0_11 = arith.constant 0 : index
    %8 = vector.load %arg5[%c0_10, %c0_11] : memref<1x52xf32, #tpu.memory_space<vmem>>, vector<1x52xf32>
    %9 = arith.addf %7, %8 : vector<1x52xf32>
    %10 = vector.extract_strided_slice %9 {offsets = [0, 0], sizes = [1, 16], strides = [1, 1]} : vector<1x52xf32> to vector<1x16xf32>
    %11 = vector.extract_strided_slice %9 {offsets = [0, 16], sizes = [1, 1], strides = [1, 1]} : vector<1x52xf32> to vector<1x1xf32>
    %12 = arith.negf %11 : vector<1x1xf32>
    %13 = math.exp %12 : vector<1x1xf32>
    %cst_12 = arith.constant 1.000000e+00 : f32
    %14 = vector.broadcast %cst_12 : f32 to vector<1x1xf32>
    %15 = arith.addf %14, %13 : vector<1x1xf32>
    %16 = arith.divf %14, %15 : vector<1x1xf32>
    %17 = vector.extract_strided_slice %9 {offsets = [0, 17], sizes = [1, 3], strides = [1, 1]} : vector<1x52xf32> to vector<1x3xf32>
    %18 = vector.extract_strided_slice %9 {offsets = [0, 20], sizes = [1, 16], strides = [1, 1]} : vector<1x52xf32> to vector<1x16xf32>
    %19 = arith.negf %18 : vector<1x16xf32>
    %20 = math.exp %19 : vector<1x16xf32>
    %cst_13 = arith.constant 1.000000e+00 : f32
    %21 = vector.broadcast %cst_13 : f32 to vector<1x16xf32>
    %22 = arith.addf %21, %20 : vector<1x16xf32>
    %23 = arith.divf %21, %22 : vector<1x16xf32>
    %24 = vector.extract_strided_slice %9 {offsets = [0, 36], sizes = [1, 16], strides = [1, 1]} : vector<1x52xf32> to vector<1x16xf32>
    %cst_14 = arith.constant dense<0xFF800000> : vector<1xf32>
    %25 = vector.multi_reduction <maximumf>, %17, %cst_14 [1] : vector<1x3xf32> to vector<1xf32>
    %26 = vector.shape_cast %25 : vector<1xf32> to vector<1x1xf32>
    %27 = vector.broadcast %26 : vector<1x1xf32> to vector<1x3xf32>
    %28 = arith.subf %17, %27 : vector<1x3xf32>
    %29 = math.exp %28 : vector<1x3xf32>
    %cst_15 = arith.constant dense<0.000000e+00> : vector<1xf32>
    %30 = vector.multi_reduction <add>, %29, %cst_15 [1] : vector<1x3xf32> to vector<1xf32>
    %31 = vector.shape_cast %30 : vector<1xf32> to vector<1x1xf32>
    %32 = tpu.reciprocal %31 : vector<1x1xf32> -> vector<1x1xf32>
    %33 = vector.broadcast %32 : vector<1x1xf32> to vector<1x3xf32>
    %34 = arith.mulf %29, %33 : vector<1x3xf32>
    %35 = vector.broadcast %10 : vector<1x16xf32> to vector<8x16xf32>
    %36 = arith.mulf %3, %35 : vector<8x16xf32>
    %cst_16 = arith.constant dense<0.000000e+00> : vector<8xf32>
    %37 = vector.multi_reduction <add>, %36, %cst_16 [1] : vector<8x16xf32> to vector<8xf32>
    %38 = vector.shape_cast %37 : vector<8xf32> to vector<8x1xf32>
    %cst_17 = arith.constant 2.500000e-01 : f32
    %39 = vector.broadcast %cst_17 : f32 to vector<8x1xf32>
    %40 = arith.mulf %38, %39 : vector<8x1xf32>
    %cst_18 = arith.constant dense<0xFF800000> : vector<1xf32>
    %41 = vector.multi_reduction <maximumf>, %40, %cst_18 [0] : vector<8x1xf32> to vector<1xf32>
    %42 = vector.shape_cast %41 : vector<1xf32> to vector<1x1xf32>
    %43 = vector.broadcast %42 : vector<1x1xf32> to vector<8x1xf32>
    %44 = arith.subf %40, %43 : vector<8x1xf32>
    %45 = math.exp %44 : vector<8x1xf32>
    %cst_19 = arith.constant dense<0.000000e+00> : vector<1xf32>
    %46 = vector.multi_reduction <add>, %45, %cst_19 [0] : vector<8x1xf32> to vector<1xf32>
    %47 = vector.shape_cast %46 : vector<1xf32> to vector<1x1xf32>
    %48 = tpu.reciprocal %47 : vector<1x1xf32> -> vector<1x1xf32>
    %49 = vector.broadcast %48 : vector<1x1xf32> to vector<8x1xf32>
    %50 = arith.mulf %45, %49 : vector<8x1xf32>
    %51 = vector.broadcast %16 : vector<1x1xf32> to vector<8x1xf32>
    %52 = arith.mulf %51, %50 : vector<8x1xf32>
    %cst_20 = arith.constant 1.000000e+00 : f32
    %53 = vector.broadcast %cst_20 : f32 to vector<1x1xf32>
    %54 = arith.subf %53, %16 : vector<1x1xf32>
    %55 = vector.broadcast %54 : vector<1x1xf32> to vector<8x1xf32>
    %56 = arith.mulf %55, %5 : vector<8x1xf32>
    %57 = arith.addf %52, %56 : vector<8x1xf32>
    %58 = vector.shape_cast %57 : vector<8x1xf32> to vector<8x1xf32>
    %59 = vector.broadcast %58 : vector<8x1xf32> to vector<8x128xf32>
    %60 = vector.extract_strided_slice %34 {offsets = [0, 1], sizes = [1, 1], strides = [1, 1]} : vector<1x3xf32> to vector<1x1xf32>
    %61 = vector.broadcast %60 : vector<1x1xf32> to vector<8x128xf32>
    %62 = arith.mulf %61, %59 : vector<8x128xf32>
    %c1_i32 = arith.constant 1 : i32
    %63 = tpu.dynamic_rotate %59 by %c1_i32 dim 0 : vector<8x128xf32>, i32 -> vector<8x128xf32>
    %64 = vector.extract_strided_slice %34 {offsets = [0, 0], sizes = [1, 1], strides = [1, 1]} : vector<1x3xf32> to vector<1x1xf32>
    %65 = vector.broadcast %64 : vector<1x1xf32> to vector<8x128xf32>
    %66 = arith.mulf %65, %63 : vector<8x128xf32>
    %67 = arith.addf %62, %66 : vector<8x128xf32>
    %c7_i32 = arith.constant 7 : i32
    %68 = tpu.dynamic_rotate %59 by %c7_i32 dim 0 : vector<8x128xf32>, i32 -> vector<8x128xf32>
    %69 = vector.extract_strided_slice %34 {offsets = [0, 2], sizes = [1, 1], strides = [1, 1]} : vector<1x3xf32> to vector<1x1xf32>
    %70 = vector.broadcast %69 : vector<1x1xf32> to vector<8x128xf32>
    %71 = arith.mulf %70, %68 : vector<8x128xf32>
    %72 = arith.addf %67, %71 : vector<8x128xf32>
    %73 = vector.extract_strided_slice %72 {offsets = [0, 0], sizes = [8, 1], strides = [1, 1]} : vector<8x128xf32> to vector<8x1xf32>
    %74 = vector.broadcast %73 : vector<8x1xf32> to vector<8x16xf32>
    %75 = vector.broadcast %23 : vector<1x16xf32> to vector<8x16xf32>
    %76 = arith.mulf %74, %75 : vector<8x16xf32>
    %cst_21 = arith.constant 1.000000e+00 : f32
    %77 = vector.broadcast %cst_21 : f32 to vector<8x16xf32>
    %78 = arith.subf %77, %76 : vector<8x16xf32>
    %79 = arith.mulf %78, %3 : vector<8x16xf32>
    %80 = vector.broadcast %73 : vector<8x1xf32> to vector<8x16xf32>
    %81 = vector.broadcast %24 : vector<1x16xf32> to vector<8x16xf32>
    %82 = arith.mulf %80, %81 : vector<8x16xf32>
    %83 = arith.addf %79, %82 : vector<8x16xf32>
    %c0_22 = arith.constant 0 : index
    %c0_23 = arith.constant 0 : index
    %c0_24 = arith.constant 0 : index
    %84 = vector.load %arg6[%c0_22, %c0_23, %c0_24] : memref<1x8x16xf32, #tpu.memory_space<vmem>>, vector<1x8x16xf32>
    %85 = vector.shape_cast %84 : vector<1x8x16xf32> to vector<8x16xf32>
    %86 = vector.shape_cast %83 : vector<8x16xf32> to vector<1x8x16xf32>
    tpu.vector_store %arg6[%c0_22, %c0_23, %c0_24], %86 {strides = array<i32>} : memref<1x8x16xf32, #tpu.memory_space<vmem>>, vector<1x8x16xf32>,
    %c0_25 = arith.constant 0 : index
    %c0_26 = arith.constant 0 : index
    %c0_27 = arith.constant 0 : index
    %87 = vector.load %arg7[%c0_25, %c0_26, %c0_27] : memref<1x8x1xf32, #tpu.memory_space<vmem>>, vector<1x8x1xf32>
    %88 = vector.shape_cast %87 : vector<1x8x1xf32> to vector<8x1xf32>
    %89 = vector.shape_cast %73 : vector<8x1xf32> to vector<1x8x1xf32>
    tpu.vector_store %arg7[%c0_25, %c0_26, %c0_27], %89 {strides = array<i32>} : memref<1x8x1xf32, #tpu.memory_space<vmem>>, vector<1x8x1xf32>,
    return
  }
  func.func @transform_0(%arg0: i32) -> (i32, i32, i32) {
    %c0_i32 = arith.constant 0 : i32
    %c0_i32_0 = arith.constant 0 : i32
    %c0_i32_1 = arith.constant 0 : i32
    return %arg0, %c0_i32, %c0_i32_0 : i32, i32, i32
  }
  func.func @transform_1(%arg0: i32) -> (i32, i32, i32) {
    %c0_i32 = arith.constant 0 : i32
    %c0_i32_0 = arith.constant 0 : i32
    %c0_i32_1 = arith.constant 0 : i32
    return %arg0, %c0_i32, %c0_i32_0 : i32, i32, i32
  }
  func.func @transform_2(%arg0: i32) -> (i32, i32, i32) {
    %c0_i32 = arith.constant 0 : i32
    %c0_i32_0 = arith.constant 0 : i32
    %c0_i32_1 = arith.constant 0 : i32
    return %arg0, %c0_i32, %c0_i32_0 : i32, i32, i32
  }
  func.func @transform_3(%arg0: i32) -> (i32, i32) {
    %c0_i32 = arith.constant 0 : i32
    %c0_i32_0 = arith.constant 0 : i32
    %c0_i32_1 = arith.constant 0 : i32
    return %c0_i32, %c0_i32_0 : i32, i32
  }
  func.func @transform_4(%arg0: i32) -> (i32, i32) {
    %c0_i32 = arith.constant 0 : i32
    %c0_i32_0 = arith.constant 0 : i32
    %c0_i32_1 = arith.constant 0 : i32
    return %c0_i32, %c0_i32_0 : i32, i32
  }
  func.func @transform_5(%arg0: i32) -> (i32, i32, i32) {
    %c0_i32 = arith.constant 0 : i32
    %c0_i32_0 = arith.constant 0 : i32
    %c0_i32_1 = arith.constant 0 : i32
    return %arg0, %c0_i32, %c0_i32_0 : i32, i32, i32
  }
  func.func @transform_6(%arg0: i32) -> (i32, i32, i32) {
    %c0_i32 = arith.constant 0 : i32
    %c0_i32_0 = arith.constant 0 : i32
    %c0_i32_1 = arith.constant 0 : i32
    return %arg0, %c0_i32, %c0_i32_0 : i32, i32, i32
  }
}

</mosaic_0001>

<llo_original>
// kernel: tpu_custom_call.1
$region0: #{tpu_custom_call.1}
  #allocation0 [shape = 'u32[]', space=smem, size = 0x4, offset = 0x4, fixed_abs, tag = 'smem constant byte address 0x4 - core index']
  #allocation1 [shape = 'u32[144,128]{1,0:T(1,128)}', space=vmem, size = 0x12000, scoped, tag = 'internal scratch']
  %s0 = inlined_call_operand.vmem [shape: f32[2,1,32], index: 0, kind: input, shape index: {}]
  %s1 = inlined_call_operand.vmem [shape: f32[2,8,16], index: 1, kind: input, shape index: {}]
  %s2 = inlined_call_operand.vmem [shape: f32[2,8,1], index: 2, kind: input, shape index: {}]
  %s3 = inlined_call_operand.hbm [shape: f32[32,52], index: 3, kind: input, shape index: {}]
  %s4 = inlined_call_operand.vmem [shape: f32[1,52], index: 4, kind: input, shape index: {}]
  %s5 = inlined_call_operand.hbm [shape: f32[2,8,16], index: 5, kind: output, shape index: {0}]
  %s6 = inlined_call_operand.vmem [shape: f32[2,8,1], index: 6, kind: output, shape index: {1}]
  %7 = xla_tuple %s5, %s6
  %s8 = sld [smem:[#allocation0]]
  $region65: #{tpu_custom_call.1} parent=0
    _
  %s10 = ssub.s32 1, %s8
  %s11 = scalar_select 0, %s10, %s8
  $region1: #{tpu_custom_call.1} parent=0
    #allocation2 [shape = 'u8[16384]{0}', space=vmem, size = 0x4000, scoped, tag = 'input window, operand 3, single buffered']
    #allocation3 [shape = 's32[2]{0}', space=sflag, size = 0x8, scoped, tag = 'scoped memory for tpu_custom_call.1']
    #allocation4 [shape = 's32[2]{0}', space=sflag, size = 0x8, scoped, tag = 'scoped memory for tpu_custom_call.1']
    #allocation5 [shape = 'u8[8192]{0}', space=vmem, size = 0x2000, scoped, tag = 'output window, operand 0']
    %12 = vsyncpa [#allocation3], 0
    %13 = vsyncpa [#allocation4], 0
    %s14 = scalar_lea.sflag [#allocation4], 1
    %15 = vsyncpa %s14, 0
    loop: start=0, step=1, limit=4
    $region2: #{tpu_custom_call.1} parent=1 // loop_pre_header
      _
    $region3: #{tpu_custom_call.1} parent=1 // loop_header
      %s17 = sphi 0, %s21
      %p18 = scmp.ge.s32.totalorder %s17, 4
      %s27 = sphi 0, %s29
      %s30 = sphi 0, %s27
      %s31 = sphi 0, %s30
      %s47 = sphi 0, %s31
      %s53 = sphi 0, %s55
      %s56 = sphi 0, %s53
      %s57 = sphi 0, %s56
      %s73 = sphi 0, %s57
      %s79 = sphi 0, %s81
      %s82 = sphi 0, %s79
      %s83 = sphi 0, %s82
      %s99 = sphi 0, %s83
      %s103 = sphi 0, %s103
      %s105 = sphi 0, %s103
      %s106 = sphi 0, %s105
      %s120 = sphi 0, %s106
      %s124 = sphi 0, %s124
      %s126 = sphi 0, %s124
      %s127 = sphi 0, %s126
      %s141 = sphi 0, %s127
      %s147 = sphi 0, %s149
      %s150 = sphi 0, %s147
      %s151 = sphi 0, %s150
      %s167 = sphi 0, %s151
      %s173 = sphi 0, %s175
      %s176 = sphi 0, %s173
      %s177 = sphi 0, %s176
      %s193 = sphi 0, %s177
    $region4: #{tpu_custom_call.1} parent=1 // loop_header_branch
      %20 = sbr.rel (%p18) target = $region8
    $region5: #{tpu_custom_call.1} parent=1 // loop_body
      %s22 = ssub.s32 %s17, 1
      %s23 = ssub.s32 %s17, 2
      %s24 = sadd.s32 %s17, 1
      %s25 = ssub.s32 %s17, %s24
      %p26 = scmp.eq.s32.totalorder %s25, 0
      %s28 = sadd.s32 %s27, 1
      %s29 = scalar_select %p26, %s27, %s28
      %p32 = pneg %p26
      %p33 = scmp.eq.s32.totalorder %s17, 1
      %p34 = por %p32, %p33
      %p35 = scmp.ne.s32.totalorder %s27, %s30
      %p36 = scmp.eq.s32.totalorder %s17, 0
      %p37 = por %p35, %p36
      %p38 = scmp.ne.s32.totalorder %s27, %s30
      %p39 = scmp.eq.s32.totalorder %s22, 1
      %p40 = por %p38, %p39
      %p41 = scmp.ne.s32.totalorder %s30, %s31
      %p42 = scmp.eq.s32.totalorder %s22, 0
      %p43 = por %p41, %p42
      %p44 = scmp.ne.s32.totalorder %s30, %s31
      %p45 = scmp.eq.s32.totalorder %s23, 1
      %p46 = por %p44, %p45
      %p48 = scmp.ne.s32.totalorder %s31, %s47
      %p49 = scmp.eq.s32.totalorder %s23, 0
      %p50 = por %p48, %p49
      %s51 = ssub.s32 %s17, %s24
      %p52 = scmp.eq.s32.totalorder %s51, 0
      %s54 = sadd.s32 %s53, 1
      %s55 = scalar_select %p52, %s53, %s54
      %p58 = pneg %p52
      %p59 = scmp.eq.s32.totalorder %s17, 1
      %p60 = por %p58, %p59
      %p61 = scmp.ne.s32.totalorder %s53, %s56
      %p62 = scmp.eq.s32.totalorder %s17, 0
      %p63 = por %p61, %p62
      %p64 = scmp.ne.s32.totalorder %s53, %s56
      %p65 = scmp.eq.s32.totalorder %s22, 1
      %p66 = por %p64, %p65
      %p67 = scmp.ne.s32.totalorder %s56, %s57
      %p68 = scmp.eq.s32.totalorder %s22, 0
      %p69 = por %p67, %p68
      %p70 = scmp.ne.s32.totalorder %s56, %s57
      %p71 = scmp.eq.s32.totalorder %s23, 1
      %p72 = por %p70, %p71
      %p74 = scmp.ne.s32.totalorder %s57, %s73
      %p75 = scmp.eq.s32.totalorder %s23, 0
      %p76 = por %p74, %p75
      %s77 = ssub.s32 %s17, %s24
      %p78 = scmp.eq.s32.totalorder %s77, 0
      %s80 = sadd.s32 %s79, 1
      %s81 = scalar_select %p78, %s79, %s80
      %p84 = pneg %p78
      %p85 = scmp.eq.s32.totalorder %s17, 1
      %p86 = por %p84, %p85
      %p87 = scmp.ne.s32.totalorder %s79, %s82
      %p88 = scmp.eq.s32.totalorder %s17, 0
      %p89 = por %p87, %p88
      %p90 = scmp.ne.s32.totalorder %s79, %s82
      %p91 = scmp.eq.s32.totalorder %s22, 1
      %p92 = por %p90, %p91
      %p93 = scmp.ne.s32.totalorder %s82, %s83
      %p94 = scmp.eq.s32.totalorder %s22, 0
      %p95 = por %p93, %p94
      %p96 = scmp.ne.s32.totalorder %s82, %s83
      %p97 = scmp.eq.s32.totalorder %s23, 1
      %p98 = por %p96, %p97
      %p100 = scmp.ne.s32.totalorder %s83, %s99
      %p101 = scmp.eq.s32.totalorder %s23, 0
      %p102 = por %p100, %p101
      %s104 = sadd.s32 %s103, 1
      %p107 = scmp.eq.s32.totalorder %s17, 1
      %p108 = scmp.ne.s32.totalorder %s103, %s105
      %p109 = scmp.eq.s32.totalorder %s17, 0
      %p110 = por %p108, %p109
      %p111 = scmp.ne.s32.totalorder %s103, %s105
      %p112 = scmp.eq.s32.totalorder %s22, 1
      %p113 = por %p111, %p112
      %p114 = scmp.ne.s32.totalorder %s105, %s106
      %p115 = scmp.eq.s32.totalorder %s22, 0
      %p116 = por %p114, %p115
      %p117 = scmp.ne.s32.totalorder %s105, %s106
      %p118 = scmp.eq.s32.totalorder %s23, 1
      %p119 = por %p117, %p118
      %p121 = scmp.ne.s32.totalorder %s106, %s120
      %p122 = scmp.eq.s32.totalorder %s23, 0
      %p123 = por %p121, %p122
      %s125 = sadd.s32 %s124, 1
      %p128 = scmp.eq.s32.totalorder %s17, 1
      %p129 = scmp.ne.s32.totalorder %s124, %s126
      %p130 = scmp.eq.s32.totalorder %s17, 0
      %p131 = por %p129, %p130
      %p132 = scmp.ne.s32.totalorder %s124, %s126
      %p133 = scmp.eq.s32.totalorder %s22, 1
      %p134 = por %p132, %p133
      %p135 = scmp.ne.s32.totalorder %s126, %s127
      %p136 = scmp.eq.s32.totalorder %s22, 0
      %p137 = por %p135, %p136
      %p138 = scmp.ne.s32.totalorder %s126, %s127
      %p139 = scmp.eq.s32.totalorder %s23, 1
      %p140 = por %p138, %p139
      %p142 = scmp.ne.s32.totalorder %s127, %s141
      %p143 = scmp.eq.s32.totalorder %s23, 0
      %p144 = por %p142, %p143
      %s145 = ssub.s32 %s17, %s24
      %p146 = scmp.eq.s32.totalorder %s145, 0
      %s148 = sadd.s32 %s147, 1
      %s149 = scalar_select %p146, %s147, %s148
      %p152 = pneg %p146
      %p153 = scmp.eq.s32.totalorder %s17, 1
      %p154 = por %p152, %p153
      %p155 = scmp.ne.s32.totalorder %s147, %s150
      %p156 = scmp.eq.s32.totalorder %s17, 0
      %p157 = por %p155, %p156
      %p158 = scmp.ne.s32.totalorder %s147, %s150
      %p159 = scmp.eq.s32.totalorder %s22, 1
      %p160 = por %p158, %p159
      %p161 = scmp.ne.s32.totalorder %s150, %s151
      %p162 = scmp.eq.s32.totalorder %s22, 0
      %p163 = por %p161, %p162
      %p164 = scmp.ne.s32.totalorder %s150, %s151
      %p165 = scmp.eq.s32.totalorder %s23, 1
      %p166 = por %p164, %p165
      %p168 = scmp.ne.s32.totalorder %s151, %s167
      %p169 = scmp.eq.s32.totalorder %s23, 0
      %p170 = por %p168, %p169
      %s171 = ssub.s32 %s17, %s24
      %p172 = scmp.eq.s32.totalorder %s171, 0
      %s174 = sadd.s32 %s173, 1
      %s175 = scalar_select %p172, %s173, %s174
      %p178 = pneg %p172
      %p179 = scmp.eq.s32.totalorder %s17, 1
      %p180 = por %p178, %p179
      %p181 = scmp.ne.s32.totalorder %s173, %s176
      %p182 = scmp.eq.s32.totalorder %s17, 0
      %p183 = por %p181, %p182
      %p184 = scmp.ne.s32.totalorder %s173, %s176
      %p185 = scmp.eq.s32.totalorder %s22, 1
      %p186 = por %p184, %p185
      %p187 = scmp.ne.s32.totalorder %s176, %s177
      %p188 = scmp.eq.s32.totalorder %s22, 0
      %p189 = por %p187, %p188
      %p190 = scmp.ne.s32.totalorder %s176, %s177
      %p191 = scmp.eq.s32.totalorder %s23, 1
      %p192 = por %p190, %p191
      %p194 = scmp.ne.s32.totalorder %s177, %s193
      %p195 = scmp.eq.s32.totalorder %s23, 0
      %p196 = por %p194, %p195
      %p197 = scmp.le.s32.totalorder 1, %s17
      %p198 = scmp.lt.s32.totalorder %s17, 3
      %p199 = pnand %p197, %p198
      %p200 = pneg %p199
      // Predicated region
      $region9: #{tpu_custom_call.1} parent=5 // pred_check
        _
      $region10: #{tpu_custom_call.1} parent=5 // pred_check_branch
        %202 = sbr.rel (%p199) target = $region12
      $region11: #{tpu_custom_call.1} parent=5 // pred_region
        %s203 = ssub.s32 %s17, 1
        // Predicated region
        $region13: #{tpu_custom_call.1} parent=11 // pred_check
          %p204 = pneg %p116
        $region14: #{tpu_custom_call.1} parent=11 // pred_check_branch
          %206 = sbr.rel (%p204) target = $region16
        $region15: #{tpu_custom_call.1} parent=11 // pred_region
          %s208 = ssub.s32 512, 512
          %209 = vsyncadd [#allocation3], %s208
          %s210 = sshll.u32 [#allocation2], 4
          %s211 = int_to_ptr.vmem [resolvable:$true] %s210
          %216 = dma.hbm_to_vmem [thread:$0]  %s3, 512, %s211, [#allocation3], 128, 128, 8
        $region16: #{tpu_custom_call.1} parent=11 // pred_fallthru
          _
        // Predicated region
        $region17: #{tpu_custom_call.1} parent=11 // pred_check
          %p217 = pneg %p137
        $region18: #{tpu_custom_call.1} parent=11 // pred_check_branch
          %219 = sbr.rel (%p217) target = $region20
        $region19: #{tpu_custom_call.1} parent=11 // pred_region
          _
        $region20: #{tpu_custom_call.1} parent=11 // pred_fallthru
          _
      $region12: #{tpu_custom_call.1} parent=5 // pred_fallthru
        _
      %p220 = scmp.lt.s32.totalorder %s17, 2
      // Predicated region
      $region21: #{tpu_custom_call.1} parent=5 // pred_check
        %p221 = pneg %p220
      $region22: #{tpu_custom_call.1} parent=5 // pred_check_branch
        %223 = sbr.rel (%p221) target = $region24
      $region23: #{tpu_custom_call.1} parent=5 // pred_region
        // Predicated region
        $region25: #{tpu_custom_call.1} parent=23 // pred_check
          %p224 = pneg %p37
        $region26: #{tpu_custom_call.1} parent=23 // pred_check_branch
          %226 = sbr.rel (%p224) target = $region28
        $region27: #{tpu_custom_call.1} parent=23 // pred_region
          %p227 = scmp.lt.s32.totalorder %s17, 1
          %s228 = scalar_select %p227, %s17, 1
          %s229 = scalar_lea.vmem %s0, %s228
        $region28: #{tpu_custom_call.1} parent=23 // pred_fallthru
          _
        // Predicated region
        $region29: #{tpu_custom_call.1} parent=23 // pred_check
          %p230 = pneg %p63
        $region30: #{tpu_custom_call.1} parent=23 // pred_check_branch
          %232 = sbr.rel (%p230) target = $region32
        $region31: #{tpu_custom_call.1} parent=23 // pred_region
          %p233 = scmp.lt.s32.totalorder %s17, 1
          %s234 = scalar_select %p233, %s17, 1
          %s235 = smul.addr %s234, 8
          %s236 = scalar_lea.vmem %s1, %s235
        $region32: #{tpu_custom_call.1} parent=23 // pred_fallthru
          _
        // Predicated region
        $region33: #{tpu_custom_call.1} parent=23 // pred_check
          %p237 = pneg %p89
        $region34: #{tpu_custom_call.1} parent=23 // pred_check_branch
          %239 = sbr.rel (%p237) target = $region36
        $region35: #{tpu_custom_call.1} parent=23 // pred_region
          %p240 = scmp.lt.s32.totalorder %s17, 1
          %s241 = scalar_select %p240, %s17, 1
          %s242 = smul.addr %s241, 8
          %s243 = scalar_lea.vmem %s2, %s242
        $region36: #{tpu_custom_call.1} parent=23 // pred_fallthru
          _
      $region24: #{tpu_custom_call.1} parent=5 // pred_fallthru
        _
      %p244 = scmp.le.s32.totalorder 1, %s17
      %p245 = scmp.lt.s32.totalorder %s17, 3
      %p246 = pnand %p244, %p245
      %p247 = pneg %p246
      // Predicated region
      $region37: #{tpu_custom_call.1} parent=5 // pred_check
        _
      $region38: #{tpu_custom_call.1} parent=5 // pred_check_branch
        %249 = sbr.rel (%p246) target = $region40
      $region39: #{tpu_custom_call.1} parent=5 // pred_region
        %s250 = ssub.s32 %s17, 1
        // Predicated region
        $region41: #{tpu_custom_call.1} parent=39 // pred_check
          %p251 = pneg %p116
        $region42: #{tpu_custom_call.1} parent=39 // pred_check_branch
          %253 = sbr.rel (%p251) target = $region44
        $region43: #{tpu_custom_call.1} parent=39 // pred_region
          %254 = dma.done [#allocation3], 512
        $region44: #{tpu_custom_call.1} parent=39 // pred_fallthru
          _
        %p255 = scmp.lt.s32.totalorder %s22, 1
        %s256 = scalar_select %p255, %s22, 1
        %s257 = scalar_lea.vmem %s0, %s256
        %p258 = pneg %p43
        %p259 = pneg %p40
        %p260 = scmp.lt.s32.totalorder %s22, 1
        %s261 = scalar_select %p260, %s22, 1
        %s262 = smul.addr %s261, 8
        %s263 = scalar_lea.vmem %s1, %s262
        %p264 = pneg %p69
        %p265 = pneg %p66
        %p266 = scmp.lt.s32.totalorder %s22, 1
        %s267 = scalar_select %p266, %s22, 1
        %s268 = smul.addr %s267, 8
        %s269 = scalar_lea.vmem %s2, %s268
        %p270 = pneg %p95
        %p271 = pneg %p92
        %p272 = pneg %p116
        %p273 = pneg %p113
        %p274 = pneg %p137
        %p275 = pneg %p134
        %p276 = pneg %p163
        %p277 = pneg %p160
        %s278 = sand.u32 %s150, 1
        %s279 = scalar_lea.sflag [#allocation4], %s278
        %s280 = sand.u32 %s150, 1
        %s281 = smul.addr %s280, 8
        %s282 = scalar_lea.vmem [#allocation5], %s281
        %p283 = pneg %p189
        %p284 = pneg %p186
        %p285 = scmp.lt.s32.totalorder %s22, 1
        %s286 = scalar_select %p285, %s22, 1
        %s287 = smul.addr %s286, 8
        %s288 = scalar_lea.vmem %s6, %s287
        %p289 = scmp.lt.s32.totalorder %s22, 1
        %s290 = scalar_select %p289, %s22, 1
        %s291 = scalar_lea.vmem %s0, %s290
        %p292 = scmp.lt.s32.totalorder %s22, 1
        %s293 = scalar_select %p292, %s22, 1
        %s294 = smul.addr %s293, 8
        %s295 = scalar_lea.vmem %s1, %s294
        %p296 = scmp.lt.s32.totalorder %s22, 1
        %s297 = scalar_select %p296, %s22, 1
        %s298 = smul.addr %s297, 8
        %s299 = scalar_lea.vmem %s2, %s298
        %p300 = scmp.lt.s32.totalorder %s22, 1
        %s301 = scalar_select %p300, %s22, 1
        %s302 = smul.addr %s301, 8
        %s303 = scalar_lea.vmem %s6, %s302
        %v304 = vld [vmem:[%s291] sm:$0x1]
        %v305 = vld [vmem:[%s295] sm:$0xff]
        %v306 = vld [vmem:[%s299] sm:$0xff]
        %v307 = vld [vmem:[#allocation2] sm:$0xff]
        %v308 = vld [vmem:[#allocation2 + $0x8] sm:$0xff]
        %v309 = vld [vmem:[#allocation2 + $0x10] sm:$0xff]
        %v310 = vld [vmem:[#allocation2 + $0x18] sm:$0xff]
        %v311 = vld [vmem:[%s4] sm:$0x1]
        %vm312 = vcmask 261120
        %v314 = vsel %vm312, %v304, 0
        %316 = vmatprep.subr.mxu0 0.0
        %317 = vmatpush1.msra.mxu0 0.0
        %318 = vmatprep.subr.mxu0 0.0
        %319 = vmatpush1.msra.mxu0 0.0
        %320 = vmatprep.subr.mxu0 0.0
        %321 = vmatpush1.msra.mxu0 0.0
        %322 = vmatprep.subr.mxu0 0.0
        %323 = vmatpush1.msra.mxu0 0.0
        %324 = vmatprep.subr.mxu0 0.0
        %325 = vmatpush1.msra.mxu0 0.0
        %326 = vmatprep.subr.mxu0 0.0
        %327 = vmatpush1.msra.mxu0 0.0
        %328 = vmatprep.subr.mxu0 0.0
        %329 = vmatpush1.msra.mxu0 0.0
        %330 = vmatprep.subr.mxu0 0.0
        %331 = vmatpush1.msra.mxu0 0.0
        %332 = vmatprep.subr.mxu0 0.0
        %333 = vmatpush1.msra.mxu0 0.0
        %334 = vmatprep.subr.mxu0 0.0
        %335 = vmatpush1.msra.mxu0 0.0
        %336 = vmatprep.subr.mxu0 0.0
        %337 = vmatpush1.msra.mxu0 0.0
        %338 = vmatprep.subr.mxu0 0.0
        %339 = vmatpush1.msra.mxu0 0.0
        %340 = vmatprep.subr.mxu0 0.0
        %341 = vmatpush1.msra.mxu0 %v310
        %342 = vmatprep.subr.mxu0 0.0
        %343 = vmatpush1.msra.mxu0 %v309
        %344 = vmatprep.subr.mxu0 0.0
        %345 = vmatpush1.msra.mxu0 %v308
        %346 = vmatprep.subr.mxu0 0.0
        %347 = vmatpush1.msra.mxu0 %v307
        %348 = vmatprep.subr.mxu0 0.0
        %349 = vmatpush2.msra.mxu0 0.0
        %350 = vmatprep.subr.mxu0 0.0
        %351 = vmatpush2.msra.mxu0 0.0
        %352 = vmatprep.subr.mxu0 0.0
        %353 = vmatpush2.msra.mxu0 0.0
        %354 = vmatprep.subr.mxu0 0.0
        %355 = vmatpush2.msra.mxu0 0.0
        %356 = vmatprep.subr.mxu0 0.0
        %357 = vmatpush2.msra.mxu0 0.0
        %358 = vmatprep.subr.mxu0 0.0
        %359 = vmatpush2.msra.mxu0 0.0
        %360 = vmatprep.subr.mxu0 0.0
        %361 = vmatpush2.msra.mxu0 0.0
        %362 = vmatprep.subr.mxu0 0.0
        %363 = vmatpush2.msra.mxu0 0.0
        %364 = vmatprep.subr.mxu0 0.0
        %365 = vmatpush2.msra.mxu0 0.0
        %366 = vmatprep.subr.mxu0 0.0
        %367 = vmatpush2.msra.mxu0 0.0
        %368 = vmatprep.subr.mxu0 0.0
        %369 = vmatpush2.msra.mxu0 0.0
        %370 = vmatprep.subr.mxu0 0.0
        %371 = vmatpush2.msra.mxu0 0.0
        %372 = vmatprep.subr.mxu0 0.0
        %373 = vmatpush2.msra.mxu0 0.0
        %374 = vmatprep.subr.mxu0 0.0
        %375 = vmatpush2.msra.mxu0 0.0
        %376 = vmatprep.subr.mxu0 0.0
        %377 = vmatpush2.msra.mxu0 0.0
        %378 = vmatprep.subr.mxu0 0.0
        %379 = vmatpush2.msra.mxu0 0.0
        %380 = vmatprep.mubr.f32.mxu0 0.0
        %381 = vmatmul.mubr.f32.gmra.mxu0 %v314
        %v382 = vpop.f32.mrf.mxu0
        %v383 = vadd.f32 %v311, %v382
        %v384 = vpop.f32.mrf.mxu0
        %385 = vdwg.mxu0
        %v386 = vxor.u32 %v383, 2147483648
        %v387 = vmul.f32 %v386, 1.442695
        %v388 = vpow.pop %v387
        %v389 = vadd.f32 %v388, 1.0
        %v390 = vrcp.pop %v389
        %v391 = vmul.f32 1.0, %v390
        %vm392 = vcmask 155784
        %v393 = vsel %vm392, %v383, -inf
        %394 = vmax.xlane.f32.xlu0 %v393
        %v395 = vpop.xlane.xlu0 %394
        %v396 = vsub.f32 %v383, %v395
        %v397 = vmul.f32 %v396, 1.442695
        %v398 = vpow.pop %v397
        %400 = vrot.lane.b32.xlu0 %v398, 111
        %v401 = vpop.permute.xlu0 %400
        %vm403 = vcmask 16384
        %v404 = vsel %vm403, %v401, 0.0
        %405 = vadd.xlane.f32.xlu0 %v404
        %v406 = vpop.xlane.xlu0 %405
        %v407 = vrcp.pop %v406
        %v408 = vmul.f32 %v398, %v407
        %v409 = vlaneseq
        %v410 = vshrl.u32 %v409, 7
        %v411 = vsub.s32 0, %v410
        %v412 = vrot.slane %v383, %v411
        %v413 = vmul.f32 %v305, %v412
        %vm414 = vcmask 130048
        %v415 = vsel %vm414, %v413, 0.0
        %416 = vadd.xlane.f32.xlu0 %v415
        %v417 = vpop.xlane.xlu0 %416
        %v418 = vmul.f32 %v417, 0.25
        %v419 = vrot.slane %v418, 4
        %v420 = vmax.f32 %v418, %v419
        %v421 = vrot.slane %v420, 2
        %v422 = vmax.f32 %v420, %v421
        %v423 = vrot.slane %v422, 1
        %v424 = vmax.f32 %v422, %v423
        %v425 = vsub.f32 %v418, %v424
        %v426 = vmul.f32 %v425, 1.442695
        %v427 = vpow.pop %v426
        %v428 = vrot.slane %v427, 4
        %v429 = vadd.f32 %v427, %v428
        %v430 = vrot.slane %v429, 2
        %v431 = vadd.f32 %v429, %v430
        %v432 = vrot.slane %v431, 1
        %v433 = vadd.f32 %v431, %v432
        %v434 = vrcp.pop %v433
        %v435 = vmul.f32 %v427, %v434
        %v436 = vlaneseq
        %v437 = vshrl.u32 %v436, 7
        %v438 = vsub.s32 0, %v437
        %v439 = vrot.slane %v391, %v438
        %v440 = vmul.f32 %v439, %v435
        %v441 = vsub.f32 1.0, %v391
        %v442 = vlaneseq
        %v443 = vshrl.u32 %v442, 7
        %v444 = vsub.s32 0, %v443
        %v445 = vrot.slane %v441, %v444
        %447 = vrot.lane.b32.xlu0 %v306, 16
        %v448 = vpop.permute.xlu0 %447
        %v450 = vmul.f32 %v445, %v448
        %v451 = vadd.f32 %v440, %v450
        %453 = vset.pattern.permute.xlu0 16
        %454 = vperm.xlu0 %453, %v451
        %v455 = vpop.permute.xlu0 %454
        %458 = vrot.lane.b32.xlu0 %v408, 110
        %v459 = vpop.permute.xlu0 %458
        %s460 = vtos %v459
        %v461 = vstv %s460
        %v463 = vmul.f32 %v461, %v455
        %v464 = vrot.slane %v455, 7
        %465 = vrot.lane.b32.xlu0 %v408, 111
        %v466 = vpop.permute.xlu0 %465
        %s467 = vtos %v466
        %v468 = vstv %s467
        %v470 = vmul.f32 %v468, %v464
        %v471 = vadd.f32 %v463, %v470
        %v472 = vrot.slane %v455, 1
        %473 = vrot.lane.b32.xlu0 %v408, 109
        %v474 = vpop.permute.xlu0 %473
        %s475 = vtos %v474
        %v476 = vstv %s475
        %v478 = vmul.f32 %v476, %v472
        %v479 = vadd.f32 %v471, %v478
        %481 = vset.pattern.permute.xlu0 0
        %482 = vperm.xlu0 %481, %v479
        %v483 = vpop.permute.xlu0 %482
        %v485 = vmul.f32 %v483, %v439
        %v486 = vsub.f32 1.0, %v485
        %488 = vrot.lane.b32.xlu0 %v305, 20
        %v489 = vpop.permute.xlu0 %488
        %v491 = vmul.f32 %v486, %v489
        %v492 = vmul.f32 %v483, %v412
        %494 = vrot.lane.b32.xlu0 %v492, 112
        %v495 = vpop.permute.xlu0 %494
        %v497 = vadd.f32 %v491, %v495
        %499 = vrot.lane.b32.xlu0 %v497, 108
        %v500 = vpop.permute.xlu0 %499
        %502 = vst.msk [vmem:[%s282] sm:$0xff] %vm414, %v500
        %vm503 = vcmask 7168
        %504 = vst.msk [vmem:[%s303] sm:$0xff] %vm503, %v479
        %s505 = sand.u32 %s150, 1
        %s506 = scalar_lea.sflag [#allocation4], %s505
        %s507 = sand.u32 %s150, 1
        %s508 = smul.addr %s507, 8
        %s509 = scalar_lea.vmem [#allocation5], %s508
        %p510 = scmp.lt.s32.totalorder %s22, 1
        %s511 = scalar_select %p510, %s22, 1
        %s512 = smul.addr %s511, 8
        %s513 = scalar_lea.vmem %s6, %s512
        // Predicated region
        $region45: #{tpu_custom_call.1} parent=39 // pred_check
          %p514 = pneg %p160
        $region46: #{tpu_custom_call.1} parent=39 // pred_check_branch
          %516 = sbr.rel (%p514) target = $region48
        $region47: #{tpu_custom_call.1} parent=39 // pred_region
          %s518 = ssub.s32 128, 128
          %519 = vsyncadd %s506, %s518
          %s520 = smul.addr %s22, 128
          %s521 = scalar_lea.hbm %s5, %s520
          %s523 = sshll.u32 %s509, 4
          %s524 = int_to_ptr.vmem [resolvable:$true] %s523
          %526 = dma.vmem_to_hbm [thread:$0]  %s524, 128, %s521, %s506
        $region48: #{tpu_custom_call.1} parent=39 // pred_fallthru
          _
        // Predicated region
        $region49: #{tpu_custom_call.1} parent=39 // pred_check
          %p527 = pneg %p186
        $region50: #{tpu_custom_call.1} parent=39 // pred_check_branch
          %529 = sbr.rel (%p527) target = $region52
        $region51: #{tpu_custom_call.1} parent=39 // pred_region
          _
        $region52: #{tpu_custom_call.1} parent=39 // pred_fallthru
          _
      $region40: #{tpu_custom_call.1} parent=5 // pred_fallthru
        _
      %p530 = scmp.le.s32.totalorder 2, %s17
      // Predicated region
      $region53: #{tpu_custom_call.1} parent=5 // pred_check
        %p531 = pneg %p530
      $region54: #{tpu_custom_call.1} parent=5 // pred_check_branch
        %533 = sbr.rel (%p531) target = $region56
      $region55: #{tpu_custom_call.1} parent=5 // pred_region
        %s534 = ssub.s32 %s17, 2
        // Predicated region
        $region57: #{tpu_custom_call.1} parent=55 // pred_check
          %p535 = pneg %p166
        $region58: #{tpu_custom_call.1} parent=55 // pred_check_branch
          %537 = sbr.rel (%p535) target = $region60
        $region59: #{tpu_custom_call.1} parent=55 // pred_region
          %s538 = sand.u32 %s151, 1
          %s539 = scalar_lea.sflag [#allocation4], %s538
          %s540 = sand.u32 %s151, 1
          %s541 = smul.addr %s540, 8
          %s542 = scalar_lea.vmem [#allocation5], %s541
          %543 = dma.done %s539, 128
        $region60: #{tpu_custom_call.1} parent=55 // pred_fallthru
          _
        // Predicated region
        $region61: #{tpu_custom_call.1} parent=55 // pred_check
          %p544 = pneg %p192
        $region62: #{tpu_custom_call.1} parent=55 // pred_check_branch
          %546 = sbr.rel (%p544) target = $region64
        $region63: #{tpu_custom_call.1} parent=55 // pred_region
          %p547 = scmp.lt.s32.totalorder %s23, 1
          %s548 = scalar_select %p547, %s23, 1
          %s549 = smul.addr %s548, 8
          %s550 = scalar_lea.vmem %s6, %s549
        $region64: #{tpu_custom_call.1} parent=55 // pred_fallthru
          _
      $region56: #{tpu_custom_call.1} parent=5 // pred_fallthru
        _
    $region6: #{tpu_custom_call.1} parent=1 // loop_footer
      %s21 = sadd.s32 1, %s17
    $region7: #{tpu_custom_call.1} parent=1 // loop_footer_branch
      %16 = sbr.rel target = $region3
    $region8: #{tpu_custom_call.1} parent=1 // loop_exit
      _
    %551 = vsyncpa [#allocation3], 1
    %s552 = scalar_lea.sflag [#allocation3], 1
    %553 = vsyncpa %s552, 1
    %554 = vsyncpa [#allocation4], 1
    %s555 = scalar_lea.sflag [#allocation4], 1
    %556 = vsyncpa %s555, 1

</llo_original>
